<compile_context>
chip_gen: v5e
topology: v5e:2x2
jax: 0.10.0
libtpu: 0.0.40
codegen_flags: <defaults>
</compile_context>

<pallas_src>
import math

import jax
import jax.numpy as jnp
from jax.experimental import pallas as pl
from jax.experimental.pallas import tpu as pltpu


def _batch_drop_kernel(bounds_ref, row_ref, col_ref, x_ref, o_ref):
    """bounds_ref: SMEM int32[4] = [sx, sx+rh, sy, sy+rw] (scalar prefetch).
    row_ref/col_ref: (1, L) int32 per-lane spatial (h, w) indices.
    x_ref/o_ref: (TN, L) tile of the flattened input/output slab."""
    sx0 = bounds_ref[0]
    sx1 = bounds_ref[1]
    sy0 = bounds_ref[2]
    sy1 = bounds_ref[3]

    r = row_ref[...]
    c = col_ref[...]
    drop = (r >= sx0) & (r < sx1) & (c >= sy0) & (c < sy1)
    keep = jnp.logical_not(drop).astype(x_ref.dtype)        # (1, L)
    # x * mask (matches the PyTorch `x * mask` semantics, incl. NaN/Inf
    # propagation inside the dropped rectangle); broadcasts over sublane rows.
    o_ref[...] = x_ref[...] * keep


def _cdiv(a, b):
    return -(-a // b)


def _choose_flat_lanes(total, hw, lane_cap=32768):
    """Pick L: a multiple of both 128 and `hw` that divides `total`, as large
    as possible but <= lane_cap (and leaving >= 8 sublane rows when the tensor
    is big enough).  Returns None if no such L exists."""
    lcm = hw * 128 // math.gcd(hw, 128)
    if lcm > lane_cap or total % lcm != 0:
        return None
    cap = min(lane_cap, max(lcm, (total // 8) // lcm * lcm))
    m = total // lcm
    for k in range(cap // lcm, 0, -1):
        if m % k == 0:
            return lcm * k
    return lcm


def _choose_row_tile(n_rows, row_bytes, itemsize, target_bytes=4 << 20):
    """Sublane tile size: a multiple of the dtype's packed sublane tile
    (8 f32 / 16 bf16 / 32 int8), ~target_bytes per block, and — when the slab
    is split at all — an even grid-step count so both v7x TensorCores get
    balanced work."""
    sub = max(8, 32 // max(itemsize, 1))
    if n_rows <= sub:
        return n_rows                            # one block == full row extent
    rows = max(sub, (target_bytes // max(row_bytes, 1)) // sub * sub)
    rows = min(rows, _cdiv(n_rows, sub) * sub)
    steps = _cdiv(n_rows, rows)
    if steps % 2 == 1:                           # prefer an even step count (>= 2)
        rows = max(sub, _cdiv(_cdiv(n_rows, steps + 1), sub) * sub)
    return min(rows, n_rows)


def batch_drop(x, h_ratio, w_ratio, sx, sy, training=True):
    """x: (B, C, H, W).  sx, sy: int32 scalars (random offsets drawn by the
    caller, mirroring random.randint in the PyTorch module)."""
    if not training:
        return x

    B, C, H, W = x.shape
    rh = int(round(h_ratio * H))
    rw = int(round(w_ratio * W))
    HW = H * W
    total = B * C * HW
    itemsize = jnp.dtype(x.dtype).itemsize

    # --- layout: lane-dense flat slab if possible, else (B*C, HW) full-extent.
    L = _choose_flat_lanes(total, HW)
    if L is None:
        L = HW
    R = total // L
    x2d = x.reshape(R, L)                        # pure view change, no copy

    # Static per-lane spatial indices (L is a multiple of HW in the flat case,
    # so every slab row starts on a map boundary; in the fallback L == HW).
    spat = jnp.arange(L, dtype=jnp.int32) % HW
    row_idx = (spat // W).reshape(1, L)
    col_idx = (spat % W).reshape(1, L)

    # Dynamic rectangle bounds via scalar prefetch (SMEM).
    bounds = jnp.stack(
        [jnp.asarray(sx), jnp.asarray(sx) + rh,
         jnp.asarray(sy), jnp.asarray(sy) + rw]).astype(jnp.int32)

    TN = _choose_row_tile(R, L * itemsize, itemsize)
    grid = (pl.cdiv(R, TN),)
    block_bytes = TN * L * itemsize
    # Double-buffered in + out (+ tiny index blocks) with headroom; explicit so
    # 4 MiB blocks never trip v5e's 16 MiB scoped-VMEM default.
    vmem_limit = min(4 * block_bytes + 16 * L * 4 + (4 << 20), 128 << 20)

    cost = pl.CostEstimate(
        flops=5 * total,                          # compares + select + multiply
        transcendentals=0,
        bytes_accessed=2 * total * itemsize + 8 * L + 16,
    )

    idx_spec = pl.BlockSpec((1, L), lambda i, b: (0, 0))
    out2d = pl.pallas_call(
        _batch_drop_kernel,
        out_shape=jax.ShapeDtypeStruct((R, L), x.dtype),
        grid_spec=pltpu.PrefetchScalarGridSpec(
            num_scalar_prefetch=1,
            grid=grid,
            in_specs=[idx_spec, idx_spec,
                      pl.BlockSpec((TN, L), lambda i, b: (i, 0))],
            out_specs=pl.BlockSpec((TN, L), lambda i, b: (i, 0)),
        ),
        compiler_params=pltpu.CompilerParams(
            dimension_semantics=("parallel",),
            vmem_limit_bytes=vmem_limit),
        cost_estimate=cost,
    )(bounds, row_idx, col_idx, x2d)

    return out2d.reshape(B, C, H, W)


def batch_drop_ref(x, h_ratio, w_ratio, sx, sy):
    """Pure-JAX reference mirroring the PyTorch module (training path)."""
    B, C, H, W = x.shape
    rh = int(round(h_ratio * H))
    rw = int(round(w_ratio * W))
    row = jnp.arange(H, dtype=jnp.int32)[:, None]
    col = jnp.arange(W, dtype=jnp.int32)[None, :]
    drop = (row >= sx) & (row < sx + rh) & (col >= sy) & (col < sy + rw)
    mask = jnp.logical_not(drop).astype(x.dtype)
    return x * mask[None, None, :, :]


if __name__ == "__main__":
    key = jax.random.PRNGKey(0)
    h_ratio, w_ratio = 0.3, 0.3

    # Case 1: lane-dense flat path (B*C*H*W divisible by lcm(H*W, 128)).
    B, C, H, W = 2, 4, 16, 16
    rh = int(round(h_ratio * H))
    rw = int(round(w_ratio * W))
    kx, ksx, ksy, key = jax.random.split(key, 4)
    x = jax.random.normal(kx, (B, C, H, W), dtype=jnp.float32)
    # random.randint(0, H - rh) is inclusive on both ends -> maxval = H-rh+1.
    sx = jax.random.randint(ksx, (), 0, H - rh + 1, dtype=jnp.int32)
    sy = jax.random.randint(ksy, (), 0, W - rw + 1, dtype=jnp.int32)
    out = jax.block_until_ready(batch_drop(x, h_ratio, w_ratio, sx, sy, training=True))
    ref = batch_drop_ref(x, h_ratio, w_ratio, sx, sy)
    assert out.shape == x.shape
    assert jnp.array_equal(out, ref), "mismatch vs reference (flat path)"

    # Case 2: fallback path (7x7 map: H*W not a multiple of 128, no pad/slice).
    B2, C2, H2, W2 = 2, 4, 7, 7
    rh2 = int(round(h_ratio * H2))
    rw2 = int(round(w_ratio * W2))
    kx2, ksx2, ksy2, key = jax.random.split(key, 4)
    x2 = jax.random.normal(kx2, (B2, C2, H2, W2), dtype=jnp.float32)
    sx2 = jax.random.randint(ksx2, (), 0, H2 - rh2 + 1, dtype=jnp.int32)
    sy2 = jax.random.randint(ksy2, (), 0, W2 - rw2 + 1, dtype=jnp.int32)
    out2 = jax.block_until_ready(batch_drop(x2, h_ratio, w_ratio, sx2, sy2, training=True))
    ref2 = batch_drop_ref(x2, h_ratio, w_ratio, sx2, sy2)
    assert jnp.array_equal(out2, ref2), "mismatch vs reference (row-major path)"

    # Eval mode is the identity (no kernel launch), as in the module.
    out_eval = batch_drop(x, h_ratio, w_ratio, sx, sy, training=False)
    assert jnp.array_equal(out_eval, x)

    print("KERNEL_OK")
</pallas_src>

<mosaic_0001>
module attributes {stable_mosaic.version = 11 : i64} {
  func.func @_batch_drop_kernel(%arg0: i32, %arg1: memref<4xi32, #tpu.memory_space<smem>>, %arg2: memref<1x256xi32, #tpu.memory_space<vmem>>, %arg3: memref<1x256xi32, #tpu.memory_space<vmem>>, %arg4: memref<8x256xf32, #tpu.memory_space<vmem>>, %arg5: memref<8x256xf32, #tpu.memory_space<vmem>>) attributes {dimension_semantics = [#tpu.dimension_semantics<parallel>], iteration_bounds = array<i64: 1>, scalar_prefetch = 1 : i64, scratch_operands = 0 : i64, tpu.core_type = #tpu.core_type<tc>, window_params = [{pipeline_mode = #tpu.pipeline_mode<synchronous>, transform_indices = @transform_0, window_bounds = array<i64: 1, 256>}, {pipeline_mode = #tpu.pipeline_mode<synchronous>, transform_indices = @transform_1, window_bounds = array<i64: 1, 256>}, {transform_indices = @transform_2, window_bounds = array<i64: 8, 256>}, {transform_indices = @transform_3, window_bounds = array<i64: 8, 256>}]} {
    %c0 = arith.constant 0 : index
    %0 = memref.load %arg1[%c0] : memref<4xi32, #tpu.memory_space<smem>>
    %c1 = arith.constant 1 : index
    %1 = memref.load %arg1[%c1] : memref<4xi32, #tpu.memory_space<smem>>
    %c2 = arith.constant 2 : index
    %2 = memref.load %arg1[%c2] : memref<4xi32, #tpu.memory_space<smem>>
    %c3 = arith.constant 3 : index
    %3 = memref.load %arg1[%c3] : memref<4xi32, #tpu.memory_space<smem>>
    %c0_0 = arith.constant 0 : index
    %c0_1 = arith.constant 0 : index
    %4 = vector.load %arg2[%c0_0, %c0_1] : memref<1x256xi32, #tpu.memory_space<vmem>>, vector<1x256xi32>
    %c0_2 = arith.constant 0 : index
    %c0_3 = arith.constant 0 : index
    %5 = vector.load %arg3[%c0_2, %c0_3] : memref<1x256xi32, #tpu.memory_space<vmem>>, vector<1x256xi32>
    %6 = vector.broadcast %0 : i32 to vector<1x256xi32>
    %7 = arith.cmpi sge, %4, %6 : vector<1x256xi32>
    %8 = vector.broadcast %1 : i32 to vector<1x256xi32>
    %9 = arith.cmpi slt, %4, %8 : vector<1x256xi32>
    %10 = arith.andi %7, %9 : vector<1x256xi1>
    %11 = vector.broadcast %2 : i32 to vector<1x256xi32>
    %12 = arith.cmpi sge, %5, %11 : vector<1x256xi32>
    %13 = arith.andi %10, %12 : vector<1x256xi1>
    %14 = vector.broadcast %3 : i32 to vector<1x256xi32>
    %15 = arith.cmpi slt, %5, %14 : vector<1x256xi32>
    %16 = arith.andi %13, %15 : vector<1x256xi1>
    %cst = arith.constant dense<true> : vector<1x256xi1>
    %17 = arith.xori %16, %cst : vector<1x256xi1>
    %18 = arith.extui %17 : vector<1x256xi1> to vector<1x256xi32>
    %19 = arith.sitofp %18 : vector<1x256xi32> to vector<1x256xf32>
    %c0_4 = arith.constant 0 : index
    %c0_5 = arith.constant 0 : index
    %20 = vector.load %arg4[%c0_4, %c0_5] : memref<8x256xf32, #tpu.memory_space<vmem>>, vector<8x256xf32>
    %21 = vector.broadcast %19 : vector<1x256xf32> to vector<8x256xf32>
    %22 = arith.mulf %20, %21 : vector<8x256xf32>
    %c0_6 = arith.constant 0 : index
    %c0_7 = arith.constant 0 : index
    %23 = vector.load %arg5[%c0_6, %c0_7] : memref<8x256xf32, #tpu.memory_space<vmem>>, vector<8x256xf32>
    tpu.vector_store %arg5[%c0_6, %c0_7], %22 {strides = array<i32>} : memref<8x256xf32, #tpu.memory_space<vmem>>, vector<8x256xf32>,
    return
  }
  func.func @transform_0(%arg0: i32, %arg1: memref<4xi32, #tpu.memory_space<smem>>) -> (i32, i32) {
    %c0_i32 = arith.constant 0 : i32
    %c0_i32_0 = arith.constant 0 : i32
    %c0_i32_1 = arith.constant 0 : i32
    return %c0_i32, %c0_i32_0 : i32, i32
  }
  func.func @transform_1(%arg0: i32, %arg1: memref<4xi32, #tpu.memory_space<smem>>) -> (i32, i32) {
    %c0_i32 = arith.constant 0 : i32
    %c0_i32_0 = arith.constant 0 : i32
    %c0_i32_1 = arith.constant 0 : i32
    return %c0_i32, %c0_i32_0 : i32, i32
  }
  func.func @transform_2(%arg0: i32, %arg1: memref<4xi32, #tpu.memory_space<smem>>) -> (i32, i32) {
    %c0_i32 = arith.constant 0 : i32
    %c0_i32_0 = arith.constant 0 : i32
    return %arg0, %c0_i32 : i32, i32
  }
  func.func @transform_3(%arg0: i32, %arg1: memref<4xi32, #tpu.memory_space<smem>>) -> (i32, i32) {
    %c0_i32 = arith.constant 0 : i32
    %c0_i32_0 = arith.constant 0 : i32
    return %arg0, %c0_i32 : i32, i32
  }
}

</mosaic_0001>

<llo_original>
// kernel: tpu_custom_call.1
$region0: #{tpu_custom_call.1}
  #allocation0 [shape = 'u32[]', space=smem, size = 0x4, offset = 0x4, fixed_abs, tag = 'smem constant byte address 0x4 - core index']
  #allocation1 [shape = 'u32[72,128]{1,0:T(1,128)}', space=vmem, size = 0x9000, scoped, tag = 'internal scratch']
  #allocation2 [shape = 's32[1]{0}', space=sflag, size = 0x4, scoped, tag = 'scoped memory for tpu_custom_call.1']
  #allocation3 [shape = 'u8[512]{0}', space=smem, size = 0x200, scoped, tag = 'prefetched SMEM operand 0']
  %s0 = inlined_call_operand.hbm [shape: s32[4], index: 0, kind: input, shape index: {}]
  %s1 = inlined_call_operand.hbm [shape: s32[1,256], index: 1, kind: input, shape index: {}]
  %s2 = inlined_call_operand.hbm [shape: s32[1,256], index: 2, kind: input, shape index: {}]
  %s3 = inlined_call_operand.hbm [shape: f32[8,256], index: 3, kind: input, shape index: {}]
  %s4 = inlined_call_operand.hbm [shape: f32[8,256], index: 4, kind: output, shape index: {}]
  %s5 = sld [smem:[#allocation0]]
  $region34: #{tpu_custom_call.1} parent=0
    _
  %s7 = ssub.s32 1, %s5
  %s8 = scalar_select 0, %s7, %s5
  %s10 = sshll.u32 %s0, 4
  %s11 = int_to_ptr.hbm [resolvable:$true] %s10
  %13 = dma.hbm_to_smem %s11, 16, [#allocation3], [#allocation2]
  %15 = dma.done [#allocation2], 16
  %16 = sfence
  $region1: #{tpu_custom_call.1} parent=0
    #allocation4 [shape = 'u8[1024]{0}', space=vmem, size = 0x400, scoped, tag = 'input window, operand 1, single buffered']
    #allocation5 [shape = 's32[1]{0}', space=sflag, size = 0x4, scoped, tag = 'scoped memory for tpu_custom_call.1']
    #allocation6 [shape = 's32[1]{0}', space=sflag, size = 0x4, scoped, tag = 'scoped memory for tpu_custom_call.1']
    #allocation7 [shape = 'u8[1024]{0}', space=vmem, size = 0x400, scoped, tag = 'input window, operand 2, single buffered']
    #allocation8 [shape = 's32[1]{0}', space=sflag, size = 0x4, scoped, tag = 'scoped memory for tpu_custom_call.1']
    #allocation9 [shape = 'u8[8192]{0}', space=vmem, size = 0x2000, scoped, tag = 'input window, operand 3, single buffered']
    #allocation10 [shape = 'u8[8192]{0}', space=vmem, size = 0x2000, scoped, tag = 'output window, operand 0, single buffered']
    %17 = vsyncpa [#allocation5], 0
    %18 = vsyncpa [#allocation8], 0
    %19 = vsyncpa [#allocation6], 0
    // Predicated region
    $region2: #{tpu_custom_call.1} parent=1 // pred_check
      _
    $region3: #{tpu_custom_call.1} parent=1 // pred_check_branch
      %21 = sbr.rel (0) target = $region5
    $region4: #{tpu_custom_call.1} parent=1 // pred_region
      %23 = vsyncadd [#allocation5], 0
      %s25 = sshll.u32 %s1, 4
      %s26 = int_to_ptr.hbm [resolvable:$true] %s25
      %s27 = sshll.u32 [#allocation4], 4
      %s28 = int_to_ptr.vmem [resolvable:$true] %s27
      %30 = dma.hbm_to_vmem [thread:$0]  %s26, 32, %s28, [#allocation5]
    $region5: #{tpu_custom_call.1} parent=1 // pred_fallthru
      _
    // Predicated region
    $region6: #{tpu_custom_call.1} parent=1 // pred_check
      _
    $region7: #{tpu_custom_call.1} parent=1 // pred_check_branch
      %32 = sbr.rel (0) target = $region9
    $region8: #{tpu_custom_call.1} parent=1 // pred_region
      %34 = vsyncadd [#allocation8], 0
      %s36 = sshll.u32 %s2, 4
      %s37 = int_to_ptr.hbm [resolvable:$true] %s36
      %s38 = sshll.u32 [#allocation7], 4
      %s39 = int_to_ptr.vmem [resolvable:$true] %s38
      %41 = dma.hbm_to_vmem [thread:$0]  %s37, 32, %s39, [#allocation8]
    $region9: #{tpu_custom_call.1} parent=1 // pred_fallthru
      _
    // Predicated region
    $region10: #{tpu_custom_call.1} parent=1 // pred_check
      _
    $region11: #{tpu_custom_call.1} parent=1 // pred_check_branch
      %43 = sbr.rel (0) target = $region13
    $region12: #{tpu_custom_call.1} parent=1 // pred_region
      %45 = vsyncadd [#allocation8], 0
      %s47 = sshll.u32 %s3, 4
      %s48 = int_to_ptr.hbm [resolvable:$true] %s47
      %s49 = sshll.u32 [#allocation9], 4
      %s50 = int_to_ptr.vmem [resolvable:$true] %s49
      %52 = dma.hbm_to_vmem [thread:$0]  %s48, 256, %s50, [#allocation8]
    $region13: #{tpu_custom_call.1} parent=1 // pred_fallthru
      _
    // Predicated region
    $region14: #{tpu_custom_call.1} parent=1 // pred_check
      _
    $region15: #{tpu_custom_call.1} parent=1 // pred_check_branch
      %54 = sbr.rel (0) target = $region17
    $region16: #{tpu_custom_call.1} parent=1 // pred_region
      %56 = dma.done [#allocation5], 32
    $region17: #{tpu_custom_call.1} parent=1 // pred_fallthru
      _
    // Predicated region
    $region18: #{tpu_custom_call.1} parent=1 // pred_check
      _
    $region19: #{tpu_custom_call.1} parent=1 // pred_check_branch
      %58 = sbr.rel (0) target = $region21
    $region20: #{tpu_custom_call.1} parent=1 // pred_region
      %60 = dma.done [#allocation8], 32
    $region21: #{tpu_custom_call.1} parent=1 // pred_fallthru
      _
    // Predicated region
    $region22: #{tpu_custom_call.1} parent=1 // pred_check
      _
    $region23: #{tpu_custom_call.1} parent=1 // pred_check_branch
      %62 = sbr.rel (0) target = $region25
    $region24: #{tpu_custom_call.1} parent=1 // pred_region
      %64 = dma.done [#allocation8], 256
    $region25: #{tpu_custom_call.1} parent=1 // pred_fallthru
      _
    %s65 = sld [smem:[#allocation3]]
    %s66 = sld [smem:[#allocation3 + $0x1]]
    %s67 = sld [smem:[#allocation3 + $0x2]]
    %s68 = sld [smem:[#allocation3 + $0x3]]
    %v69 = vld [vmem:[#allocation4] sm:$0x3]
    %v70 = vld [vmem:[#allocation7] sm:$0x3]
    %v71 = vstv %s65
    %vm72 = vcmp.ge.s32.totalorder %v69, %v71
    %v73 = vstv %s66
    %vm74 = vcmp.lt.s32.totalorder %v69, %v73
    %vm75 = vmand %vm72, %vm74
    %v76 = vstv %s67
    %vm77 = vcmp.ge.s32.totalorder %v70, %v76
    %vm78 = vmand %vm75, %vm77
    %v79 = vstv %s68
    %vm80 = vcmp.lt.s32.totalorder %v70, %v79
    %vm81 = vmand %vm78, %vm80
    %vm82 = vmxor %vm81, 1
    %v83 = vsel %vm82, 1, 0
    %v84 = vcvt.s32.f32 %v83
    %v85 = vld [vmem:[#allocation9] sm:$0xff]
    %v86 = vld [vmem:[#allocation9 + $0x8] sm:$0xff]
    %v88 = vperm.slane %v84, 0
    %v89 = vperm.slane %v84, 1
    %v92 = vmul.f32 %v85, %v88
    %v93 = vmul.f32 %v86, %v89
    %94 = vst [vmem:[#allocation10] sm:$0xff] %v92
    %95 = vst [vmem:[#allocation10 + $0x8] sm:$0xff] %v93
    // Predicated region
    $region26: #{tpu_custom_call.1} parent=1 // pred_check
      _
    $region27: #{tpu_custom_call.1} parent=1 // pred_check_branch
      %97 = sbr.rel (0) target = $region29
    $region28: #{tpu_custom_call.1} parent=1 // pred_region
      %99 = vsyncadd [#allocation6], 0
      %s101 = sshll.u32 [#allocation10], 4
      %s102 = int_to_ptr.vmem [resolvable:$true] %s101
      %s103 = sshll.u32 %s4, 4
      %s104 = int_to_ptr.hbm [resolvable:$true] %s103
      %106 = dma.vmem_to_hbm [thread:$0]  %s102, 256, %s104, [#allocation6]
    $region29: #{tpu_custom_call.1} parent=1 // pred_fallthru
      _
    // Predicated region
    $region30: #{tpu_custom_call.1} parent=1 // pred_check
      _
    $region31: #{tpu_custom_call.1} parent=1 // pred_check_branch
      %108 = sbr.rel (0) target = $region33
    $region32: #{tpu_custom_call.1} parent=1 // pred_region
      %110 = dma.done [#allocation6], 256
    $region33: #{tpu_custom_call.1} parent=1 // pred_fallthru
      _
    %111 = vsyncpa [#allocation5], 1
    %112 = vsyncpa [#allocation8], 1
    %113 = vsyncpa [#allocation6], 1

</llo_original>
